<compile_context>
chip_gen: v7x
topology: tpu7x:2x2x1
jax: 0.10.0
libtpu: 0.0.40
codegen_flags: <defaults>
</compile_context>

<pallas_src>
import functools

import jax
import jax.numpy as jnp
from jax.experimental import pallas as pl
from jax.experimental.pallas import tpu as pltpu

LANE = 128  # TPU vreg lane width; gate blocks and the vocab axis are padded to it.


# ----------------------------- Pallas kernel --------------------------------
def code_summarizer_kernel(ax_ref, w_ref, out_ref, *,
                           n, in_ch, hid, emb, vpad,
                           r_w1, r_wg, r_wfc, r_b1, r_bg, r_bfc):
    # Single lane-concatenated activation buffer: A_hat in lanes [0, n),
    # X at lane offset 128 (vreg-aligned -> both views are shift-free).
    a = ax_ref[:, 0:n]                              # (N, N) normalized adjacency
    x = ax_ref[:, LANE:LANE + in_ch]                # (N, in_ch)

    # Static views into the single packed parameter slab.
    w1 = w_ref[r_w1:r_w1 + in_ch, 0:hid]            # (in_ch, hid)
    wg = w_ref[r_wg:r_wg + hid, 0:3 * LANE]         # (hid, 3*128) i|g|o gate blocks
    wfc = w_ref[r_wfc:r_wfc + emb, 0:vpad]          # (emb, 128)   vocab padded
    # Biases pre-broadcast to N rows offline.
    b1 = w_ref[r_b1:r_b1 + n, 0:hid]
    bg = w_ref[r_bg:r_bg + n, 0:3 * LANE]
    bfc = w_ref[r_bfc:r_bfc + n, 0:vpad]

    # ---- GCNConv 1:  relu( A_hat @ (X @ W1) + b1 ) ----
    xw1 = jnp.dot(x, w1, preferred_element_type=jnp.float32)
    h1 = jnp.maximum(jnp.dot(a, xw1, preferred_element_type=jnp.float32) + b1, 0.0)

    # ---- GCNConv 2 folded into the single-step LSTM gates (h0 = c0 = 0, forget
    #      gate dead).  One matmul for all three live gates; each gate sits in a
    #      128-lane block so the splits below are vreg-aligned (no lane shifts).
    ah1 = jnp.dot(a, h1, preferred_element_type=jnp.float32)              # (N, hid)
    gates = jnp.dot(ah1, wg, preferred_element_type=jnp.float32) + bg     # (N, 384)

    i_g = jax.nn.sigmoid(gates[:, 0:LANE])
    g_g = jnp.tanh(gates[:, LANE:2 * LANE])          # padded lanes are exactly 0
    o_g = jax.nn.sigmoid(gates[:, 2 * LANE:3 * LANE])
    # c1 = i*g (since f*c0 == 0);  h = o * tanh(c1).  Lanes >= emb are exactly 0
    # because g_g is 0 there; the lane-prefix view below is shift-free.
    h = (o_g * jnp.tanh(i_g * g_g))[:, 0:emb]        # (N, emb)

    # ---- Final Linear into a lane-dense (N, 128) output tile ----
    out_ref[...] = jnp.dot(h, wfc, preferred_element_type=jnp.float32) + bfc


# ------------------------ offline parameter packing --------------------------
def _pad8(r):
    return ((r + 7) // 8) * 8


def pack_params(params, emb_dim, num_nodes):
    """Fold GCN-2 into the LSTM gate weights, pre-broadcast biases, and pack
    every parameter into ONE f32 slab (a single weight DMA)."""
    (w1, b1, w2, b2, w_ih, w_hh, b_ih, b_hh, w_fc, b_fc) = params
    del w_hh                                     # multiplies h0 == 0 -> no effect
    E = int(emb_dim)
    in_ch, hid = int(w1.shape[0]), int(w1.shape[1])
    vocab = int(w_fc.shape[1])
    vpad = -(-vocab // LANE) * LANE
    nrows = _pad8(num_nodes)

    b_lstm = b_ih + b_hh                         # h0 == 0 -> the two biases just add

    def gate(k):
        return w_ih[:, k * E:(k + 1) * E], b_lstm[:, k * E:(k + 1) * E]

    wih_i, bl_i = gate(0)                        # input gate
    wih_g, bl_g = gate(2)                        # cell candidate
    wih_o, bl_o = gate(3)                        # output gate (forget @ k=1 dead)

    # Algebraic fold of the GCN-2 projection (W2, b2) into the gate matmuls.
    fused = []
    for wih_k, bl_k in ((wih_i, bl_i), (wih_g, bl_g), (wih_o, bl_o)):
        fused.append((w2 @ wih_k, b2 @ wih_k + bl_k))

    # Lane-concat i|g|o into 128-lane blocks, zero beyond emb so the in-kernel
    # splits are vreg-aligned and the padded lanes of h come out exactly 0.
    w_gates = jnp.zeros((hid, 3 * LANE), jnp.float32)
    b_gates = jnp.zeros((1, 3 * LANE), jnp.float32)
    for k, (wk, bk) in enumerate(fused):
        w_gates = w_gates.at[:, k * LANE:k * LANE + E].set(wk)
        b_gates = b_gates.at[:, k * LANE:k * LANE + E].set(bk)

    # Vocab padded to lane-dense 128 -> unmasked output store.
    w_fc_p = jnp.zeros((E, vpad), jnp.float32).at[:, :vocab].set(w_fc)
    b_fc_p = jnp.zeros((1, vpad), jnp.float32).at[:, :vocab].set(b_fc)

    segs = [
        ("w1", w1),
        ("wg", w_gates),
        ("wfc", w_fc_p),
        ("b1", jnp.broadcast_to(b1, (nrows, hid))),
        ("bg", jnp.broadcast_to(b_gates, (nrows, 3 * LANE))),
        ("bfc", jnp.broadcast_to(b_fc_p, (nrows, vpad))),
    ]

    lane_w = max(t.shape[1] for _, t in segs)
    offs, rows = {}, 0
    for name, t in segs:
        offs[name] = rows
        rows += _pad8(t.shape[0])                # 8-row aligned segments

    slab = jnp.zeros((rows, lane_w), jnp.float32)
    for name, t in segs:
        o = offs[name]
        slab = slab.at[o:o + t.shape[0], :t.shape[1]].set(t)

    meta = dict(n=int(num_nodes), in_ch=in_ch, hid=hid, emb=E,
                vocab=vocab, vpad=vpad,
                r_w1=offs["w1"], r_wg=offs["wg"], r_wfc=offs["wfc"],
                r_b1=offs["b1"], r_bg=offs["bg"], r_bfc=offs["bfc"])
    return slab, meta


# ------------------------------ JAX wrapper ----------------------------------
def build_norm_adj(edge_index, num_nodes):
    """Dense GCN-normalized adjacency:  D^{-1/2} (A + I) D^{-1/2}."""
    src, dst = edge_index[0], edge_index[1]
    a = jnp.zeros((num_nodes, num_nodes), jnp.float32)
    a = a.at[dst, src].add(1.0)                     # messages flow src -> dst
    a = a + jnp.eye(num_nodes, dtype=jnp.float32)   # self loops
    deg = a.sum(axis=1)
    d_inv_sqrt = jnp.where(deg > 0, 1.0 / jnp.sqrt(deg), 0.0)
    return a * d_inv_sqrt[:, None] * d_inv_sqrt[None, :]


def make_code_summarizer(meta):
    n, in_ch, vocab, vpad = meta["n"], meta["in_ch"], meta["vocab"], meta["vpad"]

    kernel = functools.partial(
        code_summarizer_kernel,
        n=n, in_ch=in_ch, hid=meta["hid"], emb=meta["emb"], vpad=vpad,
        r_w1=meta["r_w1"], r_wg=meta["r_wg"], r_wfc=meta["r_wfc"],
        r_b1=meta["r_b1"], r_bg=meta["r_bg"], r_bfc=meta["r_bfc"])

    @jax.jit
    def forward(x, edge_index, w_slab):
        # One fused executable: adjacency scatter build + lane-concat + kernel.
        a_hat = build_norm_adj(edge_index, n)
        ax = jnp.zeros((n, LANE + in_ch), jnp.float32)
        ax = ax.at[:, 0:n].set(a_hat)
        ax = ax.at[:, LANE:LANE + in_ch].set(x)      # -> 2 input DMAs total

        logits_pad = pl.pallas_call(
            kernel,
            out_shape=jax.ShapeDtypeStruct((n, vpad), jnp.float32),
            in_specs=[pl.BlockSpec(ax.shape, lambda: (0, 0)),
                      pl.BlockSpec(w_slab.shape, lambda: (0, 0))],
            out_specs=pl.BlockSpec((n, vpad), lambda: (0, 0)),
            compiler_params=pltpu.CompilerParams(),
        )(ax, w_slab)
        return logits_pad[:, :vocab]                 # drop vocab padding lanes

    return forward


# ---------------------- pure-JAX reference (for checking) --------------------
def reference_forward(x, edge_index, params):
    """Faithful GCN -> single-step PyTorch-style LSTM (separate b_ih/b_hh, w_hh,
    explicit h0/c0, forget gate) -> Linear."""
    (w1, b1, w2, b2, w_ih, w_hh, b_ih, b_hh, w_fc, b_fc) = params
    a_hat = build_norm_adj(edge_index, x.shape[0])
    h1 = jnp.maximum(a_hat @ (x @ w1) + b1, 0.0)
    h2 = a_hat @ (h1 @ w2) + b2                      # LSTM input, seq_len = 1
    E = w_fc.shape[0]
    h0 = jnp.zeros((h2.shape[0], E), jnp.float32)
    c0 = jnp.zeros_like(h0)
    gates = h2 @ w_ih + h0 @ w_hh + b_ih + b_hh      # PyTorch gate order i,f,g,o
    i_g = jax.nn.sigmoid(gates[:, 0 * E:1 * E])
    f_g = jax.nn.sigmoid(gates[:, 1 * E:2 * E])
    g_g = jnp.tanh(gates[:, 2 * E:3 * E])
    o_g = jax.nn.sigmoid(gates[:, 3 * E:4 * E])
    c1 = f_g * c0 + i_g * g_g
    h = o_g * jnp.tanh(c1)
    return h @ w_fc + b_fc


# ---------------------------------- main --------------------------------------
if __name__ == "__main__":
    N = 8            # number of graph nodes
    IN_CH = 4        # in_channels
    HID_CH = 8       # hidden_channels
    OUT_CH = 8       # out_channels (GCN output / LSTM input)
    EMB = 16         # embedding_dim (LSTM hidden size)
    VOCAB = 32       # vocab_size

    key = jax.random.PRNGKey(0)
    ks = jax.random.split(key, 12)

    # Deterministic synthetic parameters (math layout; biases kept 2-D [1, dim]).
    w1 = jax.random.normal(ks[0], (IN_CH, HID_CH), jnp.float32) * 0.2
    b1 = jax.random.normal(ks[1], (1, HID_CH), jnp.float32) * 0.1
    w2 = jax.random.normal(ks[2], (HID_CH, OUT_CH), jnp.float32) * 0.2
    b2 = jax.random.normal(ks[3], (1, OUT_CH), jnp.float32) * 0.1
    w_ih = jax.random.normal(ks[4], (OUT_CH, 4 * EMB), jnp.float32) * 0.2
    w_hh = jax.random.normal(ks[5], (EMB, 4 * EMB), jnp.float32) * 0.2
    b_ih = jax.random.normal(ks[6], (1, 4 * EMB), jnp.float32) * 0.1
    b_hh = jax.random.normal(ks[7], (1, 4 * EMB), jnp.float32) * 0.1
    w_fc = jax.random.normal(ks[8], (EMB, VOCAB), jnp.float32) * 0.2
    b_fc = jax.random.normal(ks[9], (1, VOCAB), jnp.float32) * 0.1
    params = (w1, b1, w2, b2, w_ih, w_hh, b_ih, b_hh, w_fc, b_fc)

    # Offline fusion + packing (done once, outside the per-call path).
    w_slab, meta = pack_params(params, EMB, N)
    w_slab = jax.block_until_ready(w_slab)

    # Node features and a small deterministic edge list (2, E).
    x = jax.random.normal(ks[10], (N, IN_CH), jnp.float32)
    edge_index = jnp.array(
        [[0, 1, 2, 3, 4, 5, 6, 7, 1, 3],
         [1, 2, 3, 4, 5, 6, 7, 0, 0, 1]], dtype=jnp.int32)

    forward = make_code_summarizer(meta)
    logits = jax.block_until_ready(forward(x, edge_index, w_slab))

    ref = reference_forward(x, edge_index, params)
    assert logits.shape == (N, VOCAB)
    # Tolerance covers reassociation error from the offline W2 @ W_ih fold.
    assert jnp.allclose(logits, ref, atol=1e-3, rtol=1e-3), "mismatch vs reference"

    print("KERNEL_OK")
</pallas_src>

<mosaic_0001>
module attributes {stable_mosaic.version = 11 : i64} {
  func.func @code_summarizer_kernel(%arg0: memref<8x132xf32, #tpu.memory_space<vmem>>, %arg1: memref<56x384xf32, #tpu.memory_space<vmem>>, %arg2: memref<8x128xf32, #tpu.memory_space<vmem>>) attributes {dimension_semantics = [], scalar_prefetch = 0 : i64, scratch_operands = 0 : i64, tpu.core_type = #tpu.core_type<tc>} {
    %c0 = arith.constant 0 : index
    %c0_0 = arith.constant 0 : index
    %0 = vector.load %arg0[%c0, %c0_0] : memref<8x132xf32, #tpu.memory_space<vmem>>, vector<8x8xf32>
    %c0_1 = arith.constant 0 : index
    %c128 = arith.constant 128 : index
    %1 = vector.load %arg0[%c0_1, %c128] : memref<8x132xf32, #tpu.memory_space<vmem>>, vector<8x4xf32>
    %c0_2 = arith.constant 0 : index
    %c0_3 = arith.constant 0 : index
    %2 = vector.load %arg1[%c0_2, %c0_3] : memref<56x384xf32, #tpu.memory_space<vmem>>, vector<4x8xf32>
    %c8 = arith.constant 8 : index
    %c0_4 = arith.constant 0 : index
    %3 = vector.load %arg1[%c8, %c0_4] : memref<56x384xf32, #tpu.memory_space<vmem>>, vector<8x384xf32>
    %c16 = arith.constant 16 : index
    %c0_5 = arith.constant 0 : index
    %4 = vector.load %arg1[%c16, %c0_5] : memref<56x384xf32, #tpu.memory_space<vmem>>, vector<16x128xf32>
    %c32 = arith.constant 32 : index
    %c0_6 = arith.constant 0 : index
    %5 = vector.load %arg1[%c32, %c0_6] : memref<56x384xf32, #tpu.memory_space<vmem>>, vector<8x8xf32>
    %c40 = arith.constant 40 : index
    %c0_7 = arith.constant 0 : index
    %6 = vector.load %arg1[%c40, %c0_7] : memref<56x384xf32, #tpu.memory_space<vmem>>, vector<8x384xf32>
    %c48 = arith.constant 48 : index
    %c0_8 = arith.constant 0 : index
    %7 = vector.load %arg1[%c48, %c0_8] : memref<56x384xf32, #tpu.memory_space<vmem>>, vector<8x128xf32>
    %cst = arith.constant dense<0.000000e+00> : vector<8x8xf32>
    %8 = tpu.matmul %1, %2, %cst {dimension_numbers = #tpu.dot_dimension_numbers<[1], [0], [0], [1], [0, 0, 1, 1], [], []>} : vector<8x4xf32>, vector<4x8xf32>, vector<8x8xf32> -> vector<8x8xf32>
    %cst_9 = arith.constant dense<0.000000e+00> : vector<8x8xf32>
    %9 = tpu.matmul %0, %8, %cst_9 {dimension_numbers = #tpu.dot_dimension_numbers<[1], [0], [0], [1], [0, 0, 1, 1], [], []>} : vector<8x8xf32>, vector<8x8xf32>, vector<8x8xf32> -> vector<8x8xf32>
    %10 = arith.addf %9, %5 : vector<8x8xf32>
    %cst_10 = arith.constant 0.000000e+00 : f32
    %11 = vector.broadcast %cst_10 : f32 to vector<8x8xf32>
    %12 = arith.maximumf %10, %11 : vector<8x8xf32>
    %cst_11 = arith.constant dense<0.000000e+00> : vector<8x8xf32>
    %13 = tpu.matmul %0, %12, %cst_11 {dimension_numbers = #tpu.dot_dimension_numbers<[1], [0], [0], [1], [0, 0, 1, 1], [], []>} : vector<8x8xf32>, vector<8x8xf32>, vector<8x8xf32> -> vector<8x8xf32>
    %cst_12 = arith.constant dense<0.000000e+00> : vector<8x384xf32>
    %14 = tpu.matmul %13, %3, %cst_12 {dimension_numbers = #tpu.dot_dimension_numbers<[1], [0], [0], [1], [0, 0, 1, 1], [], []>} : vector<8x8xf32>, vector<8x384xf32>, vector<8x384xf32> -> vector<8x384xf32>
    %15 = arith.addf %14, %6 : vector<8x384xf32>
    %16 = vector.extract_strided_slice %15 {offsets = [0, 0], sizes = [8, 128], strides = [1, 1]} : vector<8x384xf32> to vector<8x128xf32>
    %17 = arith.negf %16 : vector<8x128xf32>
    %18 = math.exp %17 : vector<8x128xf32>
    %cst_13 = arith.constant 1.000000e+00 : f32
    %19 = vector.broadcast %cst_13 : f32 to vector<8x128xf32>
    %20 = arith.addf %19, %18 : vector<8x128xf32>
    %21 = arith.divf %19, %20 : vector<8x128xf32>
    %22 = vector.extract_strided_slice %15 {offsets = [0, 128], sizes = [8, 128], strides = [1, 1]} : vector<8x384xf32> to vector<8x128xf32>
    %23 = math.tanh %22 : vector<8x128xf32>
    %24 = vector.extract_strided_slice %15 {offsets = [0, 256], sizes = [8, 128], strides = [1, 1]} : vector<8x384xf32> to vector<8x128xf32>
    %25 = arith.negf %24 : vector<8x128xf32>
    %26 = math.exp %25 : vector<8x128xf32>
    %cst_14 = arith.constant 1.000000e+00 : f32
    %27 = vector.broadcast %cst_14 : f32 to vector<8x128xf32>
    %28 = arith.addf %27, %26 : vector<8x128xf32>
    %29 = arith.divf %27, %28 : vector<8x128xf32>
    %30 = arith.mulf %21, %23 : vector<8x128xf32>
    %31 = math.tanh %30 : vector<8x128xf32>
    %32 = arith.mulf %29, %31 : vector<8x128xf32>
    %33 = vector.extract_strided_slice %32 {offsets = [0, 0], sizes = [8, 16], strides = [1, 1]} : vector<8x128xf32> to vector<8x16xf32>
    %cst_15 = arith.constant dense<0.000000e+00> : vector<8x128xf32>
    %34 = tpu.matmul %33, %4, %cst_15 {dimension_numbers = #tpu.dot_dimension_numbers<[1], [0], [0], [1], [0, 0, 1, 1], [], []>} : vector<8x16xf32>, vector<16x128xf32>, vector<8x128xf32> -> vector<8x128xf32>
    %35 = arith.addf %34, %7 : vector<8x128xf32>
    %c0_16 = arith.constant 0 : index
    %c0_17 = arith.constant 0 : index
    %36 = vector.load %arg2[%c0_16, %c0_17] : memref<8x128xf32, #tpu.memory_space<vmem>>, vector<8x128xf32>
    tpu.vector_store %arg2[%c0_16, %c0_17], %35 {strides = array<i32>} : memref<8x128xf32, #tpu.memory_space<vmem>>, vector<8x128xf32>,
    return
  }
}

</mosaic_0001>

<llo_original>
// kernel: forward.1
$region0: #{forward.1}
  #allocation0 [shape = 'u32[]', space=smem, size = 0x4, offset = 0x4, fixed_abs, tag = 'smem constant byte address 0x4 - core index']
  #allocation1 [shape = 'u32[144,128]{1,0:T(1,128)}', space=vmem, size = 0x12000, scoped, tag = 'internal scratch']
  %s0 = inlined_call_operand.vmem [shape: f32[8,132], index: 0, kind: input, shape index: {}]
  %s1 = inlined_call_operand.vmem [shape: f32[56,384], index: 1, kind: input, shape index: {}]
  %s2 = inlined_call_operand.hbm [shape: f32[8,128], index: 2, kind: output, shape index: {}]
  %s3 = sld [smem:[#allocation0]]
  $region18: #{forward.1} parent=0
    _
  %s5 = ssub.s32 1, %s3
  %s6 = scalar_select 0, %s5, %s3
  $region1: #{forward.1} parent=0
    #allocation2 [shape = 'u8[4096]{0}', space=vmem, size = 0x1000, scoped, tag = 'output window, operand 0, single buffered']
    #allocation3 [shape = 's32[1]{0}', space=sflag, size = 0x4, scoped, tag = 'scoped memory for forward.1']
    %7 = vsyncpa [#allocation3], 0
    // Predicated region
    $region2: #{forward.1} parent=1 // pred_check
      _
    $region3: #{forward.1} parent=1 // pred_check_branch
      %9 = sbr.rel (0) target = $region5
    $region4: #{forward.1} parent=1 // pred_region
      _
    $region5: #{forward.1} parent=1 // pred_fallthru
      _
    // Predicated region
    $region6: #{forward.1} parent=1 // pred_check
      _
    $region7: #{forward.1} parent=1 // pred_check_branch
      %11 = sbr.rel (0) target = $region9
    $region8: #{forward.1} parent=1 // pred_region
      _
    $region9: #{forward.1} parent=1 // pred_fallthru
      _
    %v12 = vld [vmem:[%s0] sm:$0xff]
    %v13 = vld [vmem:[%s0 + $0x8] sm:$0xff]
    %v14 = vld [vmem:[%s1] sm:$0xf]
    %v15 = vld [vmem:[%s1 + $0x18] sm:$0xff]
    %v16 = vld [vmem:[%s1 + $0x20] sm:$0xff]
    %v17 = vld [vmem:[%s1 + $0x28] sm:$0xff]
    %v18 = vld [vmem:[%s1 + $0x30] sm:$0xff]
    %v19 = vld [vmem:[%s1 + $0x48] sm:$0xff]
    %v20 = vld [vmem:[%s1 + $0x60] sm:$0xff]
    %v21 = vld [vmem:[%s1 + $0x78] sm:$0xff]
    %v22 = vld [vmem:[%s1 + $0x80] sm:$0xff]
    %v23 = vld [vmem:[%s1 + $0x88] sm:$0xff]
    %v24 = vld [vmem:[%s1 + $0x90] sm:$0xff]
    %vm25 = vcmask 31744
    %v27 = vsel %vm25, %v13, 0
    %vm29 = vcmask 1043456
    %v31 = vsel %vm29, %v14, 0
    %33 = vmatprep.subr.mxu0 0.0
    %34 = vmatpush1.msra.mxu0 %v31
    %35 = vmatprep.subr.mxu0 0.0
    %36 = vmatpush1.msra.mxu0 0.0
    %37 = vmatprep.subr.mxu0 0.0
    %38 = vmatpush1.msra.mxu0 0.0
    %39 = vmatprep.subr.mxu0 0.0
    %40 = vmatpush1.msra.mxu0 0.0
    %41 = vmatprep.subr.mxu0 0.0
    %42 = vmatpush1.msra.mxu0 0.0
    %43 = vmatprep.subr.mxu0 0.0
    %44 = vmatpush1.msra.mxu0 0.0
    %45 = vmatprep.subr.mxu0 0.0
    %46 = vmatpush1.msra.mxu0 0.0
    %47 = vmatprep.subr.mxu0 0.0
    %48 = vmatpush1.msra.mxu0 0.0
    %49 = vmatprep.subr.mxu0 0.0
    %50 = vmatpush1.msra.mxu0 0.0
    %51 = vmatprep.subr.mxu0 0.0
    %52 = vmatpush1.msra.mxu0 0.0
    %53 = vmatprep.subr.mxu0 0.0
    %54 = vmatpush1.msra.mxu0 0.0
    %55 = vmatprep.subr.mxu0 0.0
    %56 = vmatpush1.msra.mxu0 0.0
    %57 = vmatprep.subr.mxu0 0.0
    %58 = vmatpush1.msra.mxu0 0.0
    %59 = vmatprep.subr.mxu0 0.0
    %60 = vmatpush1.msra.mxu0 0.0
    %61 = vmatprep.subr.mxu0 0.0
    %62 = vmatpush1.msra.mxu0 0.0
    %63 = vmatprep.subr.mxu0 0.0
    %64 = vmatpush1.msra.mxu0 0.0
    %65 = vmatprep.subr.mxu0 0.0
    %66 = vmatpush1.msra.mxu0 0.0
    %67 = vmatprep.subr.mxu0 0.0
    %68 = vmatpush1.msra.mxu0 0.0
    %69 = vmatprep.subr.mxu0 0.0
    %70 = vmatpush1.msra.mxu0 0.0
    %71 = vmatprep.subr.mxu0 0.0
    %72 = vmatpush1.msra.mxu0 0.0
    %73 = vmatprep.subr.mxu0 0.0
    %74 = vmatpush1.msra.mxu0 0.0
    %75 = vmatprep.subr.mxu0 0.0
    %76 = vmatpush1.msra.mxu0 0.0
    %77 = vmatprep.subr.mxu0 0.0
    %78 = vmatpush1.msra.mxu0 0.0
    %79 = vmatprep.subr.mxu0 0.0
    %80 = vmatpush1.msra.mxu0 0.0
    %81 = vmatprep.subr.mxu0 0.0
    %82 = vmatpush1.msra.mxu0 0.0
    %83 = vmatprep.subr.mxu0 0.0
    %84 = vmatpush1.msra.mxu0 0.0
    %85 = vmatprep.subr.mxu0 0.0
    %86 = vmatpush1.msra.mxu0 0.0
    %87 = vmatprep.subr.mxu0 0.0
    %88 = vmatpush1.msra.mxu0 0.0
    %89 = vmatprep.subr.mxu0 0.0
    %90 = vmatpush1.msra.mxu0 0.0
    %91 = vmatprep.subr.mxu0 0.0
    %92 = vmatpush1.msra.mxu0 0.0
    %93 = vmatprep.subr.mxu0 0.0
    %94 = vmatpush1.msra.mxu0 0.0
    %95 = vmatprep.subr.mxu0 0.0
    %96 = vmatpush1.msra.mxu0 0.0
    %97 = vmatprep.mubr.f32.mxu0 0.0
    %98 = vmatmul.mubr.f32.gmra.mrb[0].mxu0 %v27
    %v99 = vpop.f32.mrb[0].mxu0
    %v100 = vadd.f32 0.0, %v99
    %v101 = vpop.f32.mrb[0].mxu0
    %102 = vdwg.mxu0
    %vm103 = vcmask 64512
    %v105 = vsel %vm103, %v12, 0
    %107 = vmatprep.subr.mxu0 0.0
    %108 = vmatpush1.msra.mxu0 %v100
    %109 = vmatprep.subr.mxu0 0.0
    %110 = vmatpush1.msra.mxu0 0.0
    %111 = vmatprep.subr.mxu0 0.0
    %112 = vmatpush1.msra.mxu0 0.0
    %113 = vmatprep.subr.mxu0 0.0
    %114 = vmatpush1.msra.mxu0 0.0
    %115 = vmatprep.subr.mxu0 0.0
    %116 = vmatpush1.msra.mxu0 0.0
    %117 = vmatprep.subr.mxu0 0.0
    %118 = vmatpush1.msra.mxu0 0.0
    %119 = vmatprep.subr.mxu0 0.0
    %120 = vmatpush1.msra.mxu0 0.0
    %121 = vmatprep.subr.mxu0 0.0
    %122 = vmatpush1.msra.mxu0 0.0
    %123 = vmatprep.subr.mxu0 0.0
    %124 = vmatpush1.msra.mxu0 0.0
    %125 = vmatprep.subr.mxu0 0.0
    %126 = vmatpush1.msra.mxu0 0.0
    %127 = vmatprep.subr.mxu0 0.0
    %128 = vmatpush1.msra.mxu0 0.0
    %129 = vmatprep.subr.mxu0 0.0
    %130 = vmatpush1.msra.mxu0 0.0
    %131 = vmatprep.subr.mxu0 0.0
    %132 = vmatpush1.msra.mxu0 0.0
    %133 = vmatprep.subr.mxu0 0.0
    %134 = vmatpush1.msra.mxu0 0.0
    %135 = vmatprep.subr.mxu0 0.0
    %136 = vmatpush1.msra.mxu0 0.0
    %137 = vmatprep.subr.mxu0 0.0
    %138 = vmatpush1.msra.mxu0 0.0
    %139 = vmatprep.subr.mxu0 0.0
    %140 = vmatpush1.msra.mxu0 0.0
    %141 = vmatprep.subr.mxu0 0.0
    %142 = vmatpush1.msra.mxu0 0.0
    %143 = vmatprep.subr.mxu0 0.0
    %144 = vmatpush1.msra.mxu0 0.0
    %145 = vmatprep.subr.mxu0 0.0
    %146 = vmatpush1.msra.mxu0 0.0
    %147 = vmatprep.subr.mxu0 0.0
    %148 = vmatpush1.msra.mxu0 0.0
    %149 = vmatprep.subr.mxu0 0.0
    %150 = vmatpush1.msra.mxu0 0.0
    %151 = vmatprep.subr.mxu0 0.0
    %152 = vmatpush1.msra.mxu0 0.0
    %153 = vmatprep.subr.mxu0 0.0
    %154 = vmatpush1.msra.mxu0 0.0
    %155 = vmatprep.subr.mxu0 0.0
    %156 = vmatpush1.msra.mxu0 0.0
    %157 = vmatprep.subr.mxu0 0.0
    %158 = vmatpush1.msra.mxu0 0.0
    %159 = vmatprep.subr.mxu0 0.0
    %160 = vmatpush1.msra.mxu0 0.0
    %161 = vmatprep.subr.mxu0 0.0
    %162 = vmatpush1.msra.mxu0 0.0
    %163 = vmatprep.subr.mxu0 0.0
    %164 = vmatpush1.msra.mxu0 0.0
    %165 = vmatprep.subr.mxu0 0.0
    %166 = vmatpush1.msra.mxu0 0.0
    %167 = vmatprep.subr.mxu0 0.0
    %168 = vmatpush1.msra.mxu0 0.0
    %169 = vmatprep.subr.mxu0 0.0
    %170 = vmatpush1.msra.mxu0 0.0
    %171 = vmatprep.mubr.f32.mxu0 0.0
    %172 = vmatmul.mubr.f32.gmra.mrb[0].mxu0 %v105
    %v173 = vpop.f32.mrb[0].mxu0
    %v174 = vadd.f32 %v20, %v173
    %v175 = vpop.f32.mrb[0].mxu0
    %176 = vdwg.mxu0
    %v177 = vmax.f32 %v174, 0.0
    %178 = vmatprep.subr.mxu0 0.0
    %179 = vmatpush1.msra.mxu0 %v177
    %180 = vmatprep.subr.mxu0 0.0
    %181 = vmatpush1.msra.mxu0 0.0
    %182 = vmatprep.subr.mxu0 0.0
    %183 = vmatpush1.msra.mxu0 0.0
    %184 = vmatprep.subr.mxu0 0.0
    %185 = vmatpush1.msra.mxu0 0.0
    %186 = vmatprep.subr.mxu0 0.0
    %187 = vmatpush1.msra.mxu0 0.0
    %188 = vmatprep.subr.mxu0 0.0
    %189 = vmatpush1.msra.mxu0 0.0
    %190 = vmatprep.subr.mxu0 0.0
    %191 = vmatpush1.msra.mxu0 0.0
    %192 = vmatprep.subr.mxu0 0.0
    %193 = vmatpush1.msra.mxu0 0.0
    %194 = vmatprep.subr.mxu0 0.0
    %195 = vmatpush1.msra.mxu0 0.0
    %196 = vmatprep.subr.mxu0 0.0
    %197 = vmatpush1.msra.mxu0 0.0
    %198 = vmatprep.subr.mxu0 0.0
    %199 = vmatpush1.msra.mxu0 0.0
    %200 = vmatprep.subr.mxu0 0.0
    %201 = vmatpush1.msra.mxu0 0.0
    %202 = vmatprep.subr.mxu0 0.0
    %203 = vmatpush1.msra.mxu0 0.0
    %204 = vmatprep.subr.mxu0 0.0
    %205 = vmatpush1.msra.mxu0 0.0
    %206 = vmatprep.subr.mxu0 0.0
    %207 = vmatpush1.msra.mxu0 0.0
    %208 = vmatprep.subr.mxu0 0.0
    %209 = vmatpush1.msra.mxu0 0.0
    %210 = vmatprep.subr.mxu0 0.0
    %211 = vmatpush1.msra.mxu0 0.0
    %212 = vmatprep.subr.mxu0 0.0
    %213 = vmatpush1.msra.mxu0 0.0
    %214 = vmatprep.subr.mxu0 0.0
    %215 = vmatpush1.msra.mxu0 0.0
    %216 = vmatprep.subr.mxu0 0.0
    %217 = vmatpush1.msra.mxu0 0.0
    %218 = vmatprep.subr.mxu0 0.0
    %219 = vmatpush1.msra.mxu0 0.0
    %220 = vmatprep.subr.mxu0 0.0
    %221 = vmatpush1.msra.mxu0 0.0
    %222 = vmatprep.subr.mxu0 0.0
    %223 = vmatpush1.msra.mxu0 0.0
    %224 = vmatprep.subr.mxu0 0.0
    %225 = vmatpush1.msra.mxu0 0.0
    %226 = vmatprep.subr.mxu0 0.0
    %227 = vmatpush1.msra.mxu0 0.0
    %228 = vmatprep.subr.mxu0 0.0
    %229 = vmatpush1.msra.mxu0 0.0
    %230 = vmatprep.subr.mxu0 0.0
    %231 = vmatpush1.msra.mxu0 0.0
    %232 = vmatprep.subr.mxu0 0.0
    %233 = vmatpush1.msra.mxu0 0.0
    %234 = vmatprep.subr.mxu0 0.0
    %235 = vmatpush1.msra.mxu0 0.0
    %236 = vmatprep.subr.mxu0 0.0
    %237 = vmatpush1.msra.mxu0 0.0
    %238 = vmatprep.subr.mxu0 0.0
    %239 = vmatpush1.msra.mxu0 0.0
    %240 = vmatprep.subr.mxu0 0.0
    %241 = vmatpush1.msra.mxu0 0.0
    %242 = vmatprep.mubr.f32.mxu0 0.0
    %243 = vmatmul.mubr.f32.gmra.mrb[0].mxu0 %v105
    %v244 = vpop.f32.mrb[0].mxu0
    %v245 = vadd.f32 0.0, %v244
    %v246 = vpop.f32.mrb[0].mxu0
    %247 = vdwg.mxu0
    %v249 = vsel %vm103, %v245, 0
    %251 = vmatprep.subr.mxu0 %v16
    %252 = vmatpush1.msra.mxu0 %v15
    %253 = vmatprep.subr.mxu0 0.0
    %254 = vmatpush1.msra.mxu0 0.0
    %255 = vmatprep.subr.mxu0 0.0
    %256 = vmatpush1.msra.mxu0 0.0
    %257 = vmatprep.subr.mxu0 0.0
    %258 = vmatpush1.msra.mxu0 0.0
    %259 = vmatprep.subr.mxu0 0.0
    %260 = vmatpush1.msra.mxu0 0.0
    %261 = vmatprep.subr.mxu0 0.0
    %262 = vmatpush1.msra.mxu0 0.0
    %263 = vmatprep.subr.mxu0 0.0
    %264 = vmatpush1.msra.mxu0 0.0
    %265 = vmatprep.subr.mxu0 0.0
    %266 = vmatpush1.msra.mxu0 0.0
    %267 = vmatprep.subr.mxu0 0.0
    %268 = vmatpush1.msra.mxu0 0.0
    %269 = vmatprep.subr.mxu0 0.0
    %270 = vmatpush1.msra.mxu0 0.0
    %271 = vmatprep.subr.mxu0 0.0
    %272 = vmatpush1.msra.mxu0 0.0
    %273 = vmatprep.subr.mxu0 0.0
    %274 = vmatpush1.msra.mxu0 0.0
    %275 = vmatprep.subr.mxu0 0.0
    %276 = vmatpush1.msra.mxu0 0.0
    %277 = vmatprep.subr.mxu0 0.0
    %278 = vmatpush1.msra.mxu0 0.0
    %279 = vmatprep.subr.mxu0 0.0
    %280 = vmatpush1.msra.mxu0 0.0
    %281 = vmatprep.subr.mxu0 0.0
    %282 = vmatpush1.msra.mxu0 0.0
    %283 = vmatprep.subr.mxu0 0.0
    %284 = vmatpush1.msra.mxu0 0.0
    %285 = vmatprep.subr.mxu0 0.0
    %286 = vmatpush1.msra.mxu0 0.0
    %287 = vmatprep.subr.mxu0 0.0
    %288 = vmatpush1.msra.mxu0 0.0
    %289 = vmatprep.subr.mxu0 0.0
    %290 = vmatpush1.msra.mxu0 0.0
    %291 = vmatprep.subr.mxu0 0.0
    %292 = vmatpush1.msra.mxu0 0.0
    %293 = vmatprep.subr.mxu0 0.0
    %294 = vmatpush1.msra.mxu0 0.0
    %295 = vmatprep.subr.mxu0 0.0
    %296 = vmatpush1.msra.mxu0 0.0
    %297 = vmatprep.subr.mxu0 0.0
    %298 = vmatpush1.msra.mxu0 0.0
    %299 = vmatprep.subr.mxu0 0.0
    %300 = vmatpush1.msra.mxu0 0.0
    %301 = vmatprep.subr.mxu0 0.0
    %302 = vmatpush1.msra.mxu0 0.0
    %303 = vmatprep.subr.mxu0 0.0
    %304 = vmatpush1.msra.mxu0 0.0
    %305 = vmatprep.subr.mxu0 0.0
    %306 = vmatpush1.msra.mxu0 0.0
    %307 = vmatprep.subr.mxu0 0.0
    %308 = vmatpush1.msra.mxu0 0.0
    %309 = vmatprep.subr.mxu0 0.0
    %310 = vmatpush1.msra.mxu0 0.0
    %311 = vmatprep.subr.mxu0 0.0
    %312 = vmatpush1.msra.mxu0 0.0
    %313 = vmatprep.subr.mxu0 0.0
    %314 = vmatpush1.msra.mxu0 0.0
    %315 = vmatprep.mubr.f32.mxu0 0.0
    %316 = vmatmul.mubr.f32.gmra.mrb[0].mxu0 %v249
    %v317 = vpop.f32.mrb[0].mxu0
    %v318 = vadd.f32 %v21, %v317
    %v319 = vpop.f32.mrb[0].mxu0
    %v320 = vadd.f32 %v22, %v319
    %321 = vdwg.mxu0
    %322 = vmatprep.subr.mxu0 0.0
    %323 = vmatpush1.msra.mxu0 %v17
    %324 = vmatprep.subr.mxu0 0.0
    %325 = vmatpush1.msra.mxu0 0.0
    %326 = vmatprep.subr.mxu0 0.0
    %327 = vmatpush1.msra.mxu0 0.0
    %328 = vmatprep.subr.mxu0 0.0
    %329 = vmatpush1.msra.mxu0 0.0
    %330 = vmatprep.subr.mxu0 0.0
    %331 = vmatpush1.msra.mxu0 0.0
    %332 = vmatprep.subr.mxu0 0.0
    %333 = vmatpush1.msra.mxu0 0.0
    %334 = vmatprep.subr.mxu0 0.0
    %335 = vmatpush1.msra.mxu0 0.0
    %336 = vmatprep.subr.mxu0 0.0
    %337 = vmatpush1.msra.mxu0 0.0
    %338 = vmatprep.subr.mxu0 0.0
    %339 = vmatpush1.msra.mxu0 0.0
    %340 = vmatprep.subr.mxu0 0.0
    %341 = vmatpush1.msra.mxu0 0.0
    %342 = vmatprep.subr.mxu0 0.0
    %343 = vmatpush1.msra.mxu0 0.0
    %344 = vmatprep.subr.mxu0 0.0
    %345 = vmatpush1.msra.mxu0 0.0
    %346 = vmatprep.subr.mxu0 0.0
    %347 = vmatpush1.msra.mxu0 0.0
    %348 = vmatprep.subr.mxu0 0.0
    %349 = vmatpush1.msra.mxu0 0.0
    %350 = vmatprep.subr.mxu0 0.0
    %351 = vmatpush1.msra.mxu0 0.0
    %352 = vmatprep.subr.mxu0 0.0
    %353 = vmatpush1.msra.mxu0 0.0
    %354 = vmatprep.subr.mxu0 0.0
    %355 = vmatpush1.msra.mxu0 0.0
    %356 = vmatprep.subr.mxu0 0.0
    %357 = vmatpush1.msra.mxu0 0.0
    %358 = vmatprep.subr.mxu0 0.0
    %359 = vmatpush1.msra.mxu0 0.0
    %360 = vmatprep.subr.mxu0 0.0
    %361 = vmatpush1.msra.mxu0 0.0
    %362 = vmatprep.subr.mxu0 0.0
    %363 = vmatpush1.msra.mxu0 0.0
    %364 = vmatprep.subr.mxu0 0.0
    %365 = vmatpush1.msra.mxu0 0.0
    %366 = vmatprep.subr.mxu0 0.0
    %367 = vmatpush1.msra.mxu0 0.0
    %368 = vmatprep.subr.mxu0 0.0
    %369 = vmatpush1.msra.mxu0 0.0
    %370 = vmatprep.subr.mxu0 0.0
    %371 = vmatpush1.msra.mxu0 0.0
    %372 = vmatprep.subr.mxu0 0.0
    %373 = vmatpush1.msra.mxu0 0.0
    %374 = vmatprep.subr.mxu0 0.0
    %375 = vmatpush1.msra.mxu0 0.0
    %376 = vmatprep.subr.mxu0 0.0
    %377 = vmatpush1.msra.mxu0 0.0
    %378 = vmatprep.subr.mxu0 0.0
    %379 = vmatpush1.msra.mxu0 0.0
    %380 = vmatprep.subr.mxu0 0.0
    %381 = vmatpush1.msra.mxu0 0.0
    %382 = vmatprep.subr.mxu0 0.0
    %383 = vmatpush1.msra.mxu0 0.0
    %384 = vmatprep.subr.mxu0 0.0
    %385 = vmatpush1.msra.mxu0 0.0
    %386 = vmatprep.mubr.f32.mxu0 0.0
    %387 = vmatmul.mubr.f32.gmra.mrb[0].mxu0 %v249
    %v388 = vpop.f32.mrb[0].mxu0
    %v389 = vadd.f32 %v23, %v388
    %v390 = vpop.f32.mrb[0].mxu0
    %391 = vdwg.mxu0
    %v392 = vxor.u32 %v318, 2147483648
    %v393 = vmul.f32 %v392, 1.442695
    %v394 = vpow.pop %v393
    %v395 = vadd.f32 %v394, 1.0
    %v396 = vrcp.pop %v395
    %v397 = vmul.f32 1.0, %v396
    %v398 = vtanh.pop %v320
    %v399 = vxor.u32 %v389, 2147483648
    %v400 = vmul.f32 %v399, 1.442695
    %v401 = vpow.pop %v400
    %v402 = vadd.f32 %v401, 1.0
    %v403 = vrcp.pop %v402
    %v404 = vmul.f32 1.0, %v403
    %v405 = vmul.f32 %v397, %v398
    %v406 = vtanh.pop %v405
    %v407 = vmul.f32 %v404, %v406
    %vm408 = vcmask 130048
    %v410 = vsel %vm408, %v407, 0
    %412 = vmatprep.subr.mxu0 0.0
    %413 = vmatpush1.msra.mxu0 %v18
    %414 = vmatprep.subr.mxu0 0.0
    %415 = vmatpush1.msra.mxu0 %v19
    %416 = vmatprep.subr.mxu0 0.0
    %417 = vmatpush1.msra.mxu0 0.0
    %418 = vmatprep.subr.mxu0 0.0
    %419 = vmatpush1.msra.mxu0 0.0
    %420 = vmatprep.subr.mxu0 0.0
    %421 = vmatpush1.msra.mxu0 0.0
    %422 = vmatprep.subr.mxu0 0.0
    %423 = vmatpush1.msra.mxu0 0.0
    %424 = vmatprep.subr.mxu0 0.0
    %425 = vmatpush1.msra.mxu0 0.0
    %426 = vmatprep.subr.mxu0 0.0
    %427 = vmatpush1.msra.mxu0 0.0
    %428 = vmatprep.subr.mxu0 0.0
    %429 = vmatpush1.msra.mxu0 0.0
    %430 = vmatprep.subr.mxu0 0.0
    %431 = vmatpush1.msra.mxu0 0.0
    %432 = vmatprep.subr.mxu0 0.0
    %433 = vmatpush1.msra.mxu0 0.0
    %434 = vmatprep.subr.mxu0 0.0
    %435 = vmatpush1.msra.mxu0 0.0
    %436 = vmatprep.subr.mxu0 0.0
    %437 = vmatpush1.msra.mxu0 0.0
    %438 = vmatprep.subr.mxu0 0.0
    %439 = vmatpush1.msra.mxu0 0.0
    %440 = vmatprep.subr.mxu0 0.0
    %441 = vmatpush1.msra.mxu0 0.0
    %442 = vmatprep.subr.mxu0 0.0
    %443 = vmatpush1.msra.mxu0 0.0
    %444 = vmatprep.subr.mxu0 0.0
    %445 = vmatpush1.msra.mxu0 0.0
    %446 = vmatprep.subr.mxu0 0.0
    %447 = vmatpush1.msra.mxu0 0.0
    %448 = vmatprep.subr.mxu0 0.0
    %449 = vmatpush1.msra.mxu0 0.0
    %450 = vmatprep.subr.mxu0 0.0
    %451 = vmatpush1.msra.mxu0 0.0
    %452 = vmatprep.subr.mxu0 0.0
    %453 = vmatpush1.msra.mxu0 0.0
    %454 = vmatprep.subr.mxu0 0.0
    %455 = vmatpush1.msra.mxu0 0.0
    %456 = vmatprep.subr.mxu0 0.0
    %457 = vmatpush1.msra.mxu0 0.0
    %458 = vmatprep.subr.mxu0 0.0
    %459 = vmatpush1.msra.mxu0 0.0
    %460 = vmatprep.subr.mxu0 0.0
    %461 = vmatpush1.msra.mxu0 0.0
    %462 = vmatprep.subr.mxu0 0.0
    %463 = vmatpush1.msra.mxu0 0.0
    %464 = vmatprep.subr.mxu0 0.0
    %465 = vmatpush1.msra.mxu0 0.0
    %466 = vmatprep.subr.mxu0 0.0
    %467 = vmatpush1.msra.mxu0 0.0
    %468 = vmatprep.subr.mxu0 0.0
    %469 = vmatpush1.msra.mxu0 0.0
    %470 = vmatprep.subr.mxu0 0.0
    %471 = vmatpush1.msra.mxu0 0.0
    %472 = vmatprep.subr.mxu0 0.0
    %473 = vmatpush1.msra.mxu0 0.0
    %474 = vmatprep.subr.mxu0 0.0
    %475 = vmatpush1.msra.mxu0 0.0
    %476 = vmatprep.mubr.f32.mxu0 0.0
    %477 = vmatmul.mubr.f32.gmra.mrb[0].mxu0 %v410
    %v478 = vpop.f32.mrb[0].mxu0
    %v479 = vadd.f32 %v24, %v478
    %v480 = vpop.f32.mrb[0].mxu0
    %481 = vdwg.mxu0
    %482 = vst [vmem:[#allocation2] sm:$0xff] %v479
    // Predicated region
    $region10: #{forward.1} parent=1 // pred_check
      _
    $region11: #{forward.1} parent=1 // pred_check_branch
      %484 = sbr.rel (0) target = $region13
    $region12: #{forward.1} parent=1 // pred_region
      %s486 = ssub.s32 128, 128
      %487 = vsyncadd [#allocation3], %s486
      %s489 = sshll.u32 [#allocation2], 4
      %s490 = int_to_ptr.vmem [resolvable:$true] %s489
      %492 = dma.vmem_to_hbm [thread:$0]  %s490, 128, %s2, [#allocation3]
    $region13: #{forward.1} parent=1 // pred_fallthru
      _
    // Predicated region
    $region14: #{forward.1} parent=1 // pred_check
      _
    $region15: #{forward.1} parent=1 // pred_check_branch
      %494 = sbr.rel (0) target = $region17
    $region16: #{forward.1} parent=1 // pred_region
      %495 = dma.done [#allocation3], 128
    $region17: #{forward.1} parent=1 // pred_fallthru
      _
    %496 = vsyncpa [#allocation3], 1

</llo_original>
